<compile_context>
chip_gen: v5e
topology: v5e:2x2
jax: 0.10.0
libtpu: 0.0.40
codegen_flags: <defaults>
</compile_context>

<pallas_src>
import jax
import jax.numpy as jnp
from jax.experimental import pallas as pl
from jax.experimental.pallas import tpu as pltpu


# Per-buffer logits budget; Pallas double-buffers inputs, so the streamed
# working set is ~2x this plus (small) label bytes. Fits v5e/v6e/v7x scoped VMEM.
_LOGIT_BUDGET_BYTES = 3 * 1024 * 1024


def _choose_tiling(n, c, hw, itemsize, pixel_tile=None, images_per_block=None):
    """Pick (images_per_block, pixel_tile, padded_hw) from a VMEM byte budget."""
    per_pixel_bytes = c * itemsize
    max_pixels = max(128, (_LOGIT_BUDGET_BYTES // per_pixel_bytes) // 128 * 128)

    if pixel_tile is None:
        hw_ceil = ((hw + 127) // 128) * 128
        pixel_tile = min(hw_ceil, max_pixels)
    assert pixel_tile % 128 == 0, "pixel_tile must be a multiple of 128"

    hw_pad = ((hw + pixel_tile - 1) // pixel_tile) * pixel_tile

    if images_per_block is None:
        if hw_pad == pixel_tile:
            # Whole (padded) image fits in one tile: batch images per grid step
            # so each DMA moves a multi-MiB slab.
            images_per_block = max(1, min(n, max_pixels // pixel_tile))
        else:
            images_per_block = 1
    while n % images_per_block:
        images_per_block -= 1
    return images_per_block, pixel_tile, hw_pad


def _make_ce_kernel(hw_valid, hw_pad):
    needs_mask = hw_pad != hw_valid

    def kernel(logits_ref, labels_ref, out_ref):
        # logits_ref: (Nb, C, Pt) input dtype   labels_ref: (Nb, 1, Pt) int
        # out_ref:    (1, 1, 1, 1) f32 partial CE sum for this (image-block, tile)
        logits = logits_ref[...].astype(jnp.float32)              # (Nb, C, Pt)
        labels = labels_ref[...].astype(jnp.int32)                 # (Nb, 1, Pt)
        nb, c, pt = logits.shape

        # Numerically stable per-pixel CE without log-softmax / one-hot temps:
        #   ce = log(sum_j exp(z_j - m)) - (z_y - m)
        m = jnp.max(logits, axis=1, keepdims=True)                 # (Nb, 1, Pt)
        shifted = logits - m                                        # (Nb, C, Pt)
        sumexp = jnp.sum(jnp.exp(shifted), axis=1, keepdims=True)   # (Nb, 1, Pt)
        class_ids = jax.lax.broadcasted_iota(jnp.int32, (nb, c, pt), 1)
        shifted_at_label = jnp.sum(
            jnp.where(class_ids == labels, shifted, 0.0),
            axis=1, keepdims=True)                                  # (Nb, 1, Pt)
        ce = jnp.log(sumexp) - shifted_at_label                     # (Nb, 1, Pt)

        if needs_mask:
            t = pl.program_id(1)
            pix = t * pt + jax.lax.broadcasted_iota(jnp.int32, (nb, 1, pt), 2)
            ce = jnp.where(pix < hw_valid, ce, 0.0)

        out_ref[...] = jnp.full((1, 1, 1, 1), jnp.sum(ce), dtype=out_ref.dtype)

    return kernel


def multi_ce_loss(pred, mask, *, pixel_tile=None, images_per_block=None):
    """Equivalent of nn.CrossEntropyLoss()(pred, mask).

    pred: (N, C, H, W) float logits; mask: (N, H, W) integer class ids.
    """
    # TODO(synk): PyTorch ignore_index=-100 / class weights are not handled
    # (MultiCELoss uses the defaults and NeoPolyp masks are always in [0, C)).
    n, c, h, w = pred.shape
    hw = h * w
    itemsize = jnp.dtype(pred.dtype).itemsize
    nb, pt, hw_pad = _choose_tiling(n, c, hw, itemsize, pixel_tile, images_per_block)

    logits = pred.reshape(n, c, hw)          # free reshape, no transpose
    labels = mask.reshape(n, 1, hw)          # keep caller's (narrow) int dtype
    if hw_pad != hw:
        logits = jnp.pad(logits, ((0, 0), (0, 0), (0, hw_pad - hw)))
        labels = jnp.pad(labels, ((0, 0), (0, 0), (0, hw_pad - hw)))

    g_n = n // nb
    g_t = hw_pad // pt

    partials = pl.pallas_call(
        _make_ce_kernel(hw, hw_pad),
        out_shape=jax.ShapeDtypeStruct((g_n, g_t, 1, 1), jnp.float32),
        grid_spec=pltpu.PrefetchScalarGridSpec(
            num_scalar_prefetch=0,
            grid=(g_n, g_t),
            in_specs=[
                pl.BlockSpec((nb, c, pt), lambda i, t: (i, 0, t)),
                pl.BlockSpec((nb, 1, pt), lambda i, t: (i, 0, t)),
            ],
            out_specs=pl.BlockSpec((1, 1, 1, 1), lambda i, t: (i, t, 0, 0)),
        ),
        compiler_params=pltpu.CompilerParams(
            dimension_semantics=("parallel", "parallel"),
            vmem_limit_bytes=32 * 1024 * 1024,
        ),
    )(logits, labels)

    # reduction='mean' over all N*H*W pixels (default CrossEntropyLoss).
    return jnp.sum(partials) / jnp.float32(n * hw)


def _reference_ce(pred, mask):
    logp = jax.nn.log_softmax(pred.astype(jnp.float32), axis=1)
    onehot = jax.nn.one_hot(mask, pred.shape[1], axis=1, dtype=jnp.float32)
    return -jnp.mean(jnp.sum(onehot * logp, axis=1))


if __name__ == "__main__":
    key = jax.random.PRNGKey(0)
    k1, k2, k3, k4 = jax.random.split(key, 4)

    # Case 1: HW multiple of 128 — auto tiling (images batched per step) and a
    # forced 128-pixel tile (exercises the multi-tile parallel grid).
    N, C, H, W = 2, 4, 16, 16
    pred = jax.random.normal(k1, (N, C, H, W), dtype=jnp.float32)
    mask = jax.random.randint(k2, (N, H, W), 0, C, dtype=jnp.int32)
    ref = _reference_ce(pred, mask)
    loss_auto = jax.block_until_ready(multi_ce_loss(pred, mask))
    loss_tiled = jax.block_until_ready(multi_ce_loss(pred, mask, pixel_tile=128))
    assert jnp.allclose(loss_auto, ref, rtol=1e-5, atol=1e-5), (loss_auto, ref)
    assert jnp.allclose(loss_tiled, ref, rtol=1e-5, atol=1e-5), (loss_tiled, ref)

    # Case 2: HW not a multiple of 128 — padded pixel axis + in-kernel mask.
    N2, C2, H2, W2 = 3, 5, 10, 10
    pred2 = jax.random.normal(k3, (N2, C2, H2, W2), dtype=jnp.float32)
    mask2 = jax.random.randint(k4, (N2, H2, W2), 0, C2, dtype=jnp.int32)
    ref2 = _reference_ce(pred2, mask2)
    loss2 = jax.block_until_ready(multi_ce_loss(pred2, mask2))
    assert jnp.allclose(loss2, ref2, rtol=1e-5, atol=1e-5), (loss2, ref2)

    print("KERNEL_OK")
</pallas_src>

<mosaic_0001>
module attributes {stable_mosaic.version = 11 : i64} {
  func.func @kernel(%arg0: i32, %arg1: i32, %arg2: memref<2x4x256xf32, #tpu.memory_space<vmem>>, %arg3: memref<2x1x256xi32, #tpu.memory_space<vmem>>, %arg4: memref<1x1x1x1xf32, #tpu.memory_space<vmem>>) attributes {dimension_semantics = [#tpu.dimension_semantics<parallel>, #tpu.dimension_semantics<parallel>], iteration_bounds = array<i64: 1, 1>, scalar_prefetch = 0 : i64, scratch_operands = 0 : i64, tpu.core_type = #tpu.core_type<tc>, window_params = [{transform_indices = @transform_0, window_bounds = array<i64: 2, 4, 256>}, {transform_indices = @transform_1, window_bounds = array<i64: 2, 1, 256>}, {transform_indices = @transform_2, window_bounds = array<i64: 1, 1, 1, 1>}]} {
    %c0 = arith.constant 0 : index
    %c0_0 = arith.constant 0 : index
    %c0_1 = arith.constant 0 : index
    %0 = vector.load %arg2[%c0, %c0_0, %c0_1] : memref<2x4x256xf32, #tpu.memory_space<vmem>>, vector<2x4x256xf32>
    %c0_2 = arith.constant 0 : index
    %c0_3 = arith.constant 0 : index
    %c0_4 = arith.constant 0 : index
    %1 = vector.load %arg3[%c0_2, %c0_3, %c0_4] : memref<2x1x256xi32, #tpu.memory_space<vmem>>, vector<2x1x256xi32>
    %cst = arith.constant dense<0xFF800000> : vector<2x256xf32>
    %2 = vector.multi_reduction <maximumf>, %0, %cst [1] : vector<2x4x256xf32> to vector<2x256xf32>
    %3 = vector.shape_cast %2 : vector<2x256xf32> to vector<2x1x256xf32>
    %4 = vector.broadcast %3 : vector<2x1x256xf32> to vector<2x4x256xf32>
    %5 = arith.subf %0, %4 : vector<2x4x256xf32>
    %6 = math.exp %5 : vector<2x4x256xf32>
    %cst_5 = arith.constant dense<0.000000e+00> : vector<2x256xf32>
    %7 = vector.multi_reduction <add>, %6, %cst_5 [1] : vector<2x4x256xf32> to vector<2x256xf32>
    %8 = vector.shape_cast %7 : vector<2x256xf32> to vector<2x1x256xf32>
    %9 = tpu.iota {dimensions = array<i32: 1>} : vector<2x4x256xi32>
    %10 = vector.broadcast %1 : vector<2x1x256xi32> to vector<2x4x256xi32>
    %11 = arith.cmpi eq, %9, %10 : vector<2x4x256xi32>
    %cst_6 = arith.constant 0.000000e+00 : f32
    %12 = vector.broadcast %cst_6 : f32 to vector<2x4x256xf32>
    %13 = arith.select %11, %5, %12 : vector<2x4x256xi1>, vector<2x4x256xf32>
    %cst_7 = arith.constant dense<0.000000e+00> : vector<2x256xf32>
    %14 = vector.multi_reduction <add>, %13, %cst_7 [1] : vector<2x4x256xf32> to vector<2x256xf32>
    %15 = vector.shape_cast %14 : vector<2x256xf32> to vector<2x1x256xf32>
    %16 = math.log %8 : vector<2x1x256xf32>
    %17 = arith.subf %16, %15 : vector<2x1x256xf32>
    %18 = vector.shape_cast %17 : vector<2x1x256xf32> to vector<1x2x1x256xf32>
    %cst_8 = arith.constant dense<0.000000e+00> : vector<1xf32>
    %19 = vector.multi_reduction <add>, %18, %cst_8 [1, 2, 3] : vector<1x2x1x256xf32> to vector<1xf32>
    %20 = vector.shape_cast %19 : vector<1xf32> to vector<1x1x1x1xf32>
    %21 = vector.extract %20[0, 0, 0, 0] : f32 from vector<1x1x1x1xf32>
    %22 = vector.broadcast %21 : f32 to vector<1x1x1x1xf32>
    %c0_9 = arith.constant 0 : index
    %c0_10 = arith.constant 0 : index
    %c0_11 = arith.constant 0 : index
    %c0_12 = arith.constant 0 : index
    %23 = vector.load %arg4[%c0_9, %c0_10, %c0_11, %c0_12] : memref<1x1x1x1xf32, #tpu.memory_space<vmem>>, vector<1x1x1x1xf32>
    tpu.vector_store %arg4[%c0_9, %c0_10, %c0_11, %c0_12], %22 {strides = array<i32>} : memref<1x1x1x1xf32, #tpu.memory_space<vmem>>, vector<1x1x1x1xf32>,
    return
  }
  func.func @transform_0(%arg0: i32, %arg1: i32) -> (i32, i32, i32) {
    %c0_i32 = arith.constant 0 : i32
    %c0_i32_0 = arith.constant 0 : i32
    return %arg0, %c0_i32, %arg1 : i32, i32, i32
  }
  func.func @transform_1(%arg0: i32, %arg1: i32) -> (i32, i32, i32) {
    %c0_i32 = arith.constant 0 : i32
    %c0_i32_0 = arith.constant 0 : i32
    return %arg0, %c0_i32, %arg1 : i32, i32, i32
  }
  func.func @transform_2(%arg0: i32, %arg1: i32) -> (i32, i32, i32, i32) {
    %c0_i32 = arith.constant 0 : i32
    %c0_i32_0 = arith.constant 0 : i32
    %c0_i32_1 = arith.constant 0 : i32
    return %arg0, %arg1, %c0_i32, %c0_i32_0 : i32, i32, i32, i32
  }
}

</mosaic_0001>

<llo_original>
// kernel: tpu_custom_call.1
$region0: #{tpu_custom_call.1}
  #allocation0 [shape = 'u32[]', space=smem, size = 0x4, offset = 0x4, fixed_abs, tag = 'smem constant byte address 0x4 - core index']
  #allocation1 [shape = 'u32[72,128]{1,0:T(1,128)}', space=vmem, size = 0x9000, scoped, tag = 'internal scratch']
  %s0 = inlined_call_operand.hbm [shape: f32[2,4,256], index: 0, kind: input, shape index: {}]
  %s1 = inlined_call_operand.hbm [shape: s32[2,1,256], index: 1, kind: input, shape index: {}]
  %s2 = inlined_call_operand.hbm [shape: f32[1,1,1,1], index: 2, kind: output, shape index: {}]
  %s3 = sld [smem:[#allocation0]]
  $region26: #{tpu_custom_call.1} parent=0
    _
  %s5 = ssub.s32 1, %s3
  %s6 = scalar_select 0, %s5, %s3
  $region1: #{tpu_custom_call.1} parent=0
    #allocation2 [shape = 'u8[8192]{0}', space=vmem, size = 0x2000, scoped, tag = 'input window, operand 0, single buffered']
    #allocation3 [shape = 's32[1]{0}', space=sflag, size = 0x4, scoped, tag = 'scoped memory for tpu_custom_call.1']
    #allocation4 [shape = 's32[1]{0}', space=sflag, size = 0x4, scoped, tag = 'scoped memory for tpu_custom_call.1']
    #allocation5 [shape = 'u8[2048]{0}', space=vmem, size = 0x800, scoped, tag = 'input window, operand 1, single buffered']
    #allocation6 [shape = 's32[1]{0}', space=sflag, size = 0x4, scoped, tag = 'scoped memory for tpu_custom_call.1']
    #allocation7 [shape = 'u8[512]{0}', space=vmem, size = 0x400, scoped, tag = 'output window, operand 0, single buffered']
    %7 = vsyncpa [#allocation3], 0
    %8 = vsyncpa [#allocation6], 0
    %9 = vsyncpa [#allocation4], 0
    // Predicated region
    $region2: #{tpu_custom_call.1} parent=1 // pred_check
      _
    $region3: #{tpu_custom_call.1} parent=1 // pred_check_branch
      %11 = sbr.rel (0) target = $region5
    $region4: #{tpu_custom_call.1} parent=1 // pred_region
      %13 = vsyncadd [#allocation3], 0
      %s14 = sshll.u32 %s0, 4
      %s15 = int_to_ptr.hbm [resolvable:$true] %s14
      %s16 = sshll.u32 [#allocation2], 4
      %s17 = int_to_ptr.vmem [resolvable:$true] %s16
      %22 = dma.hbm_to_vmem [thread:$0]  %s15, 256, %s17, [#allocation3], 128, 128, 8
    $region5: #{tpu_custom_call.1} parent=1 // pred_fallthru
      _
    // Predicated region
    $region6: #{tpu_custom_call.1} parent=1 // pred_check
      _
    $region7: #{tpu_custom_call.1} parent=1 // pred_check_branch
      %24 = sbr.rel (0) target = $region9
    $region8: #{tpu_custom_call.1} parent=1 // pred_region
      %26 = vsyncadd [#allocation6], 0
      %s27 = sshll.u32 %s1, 4
      %s28 = int_to_ptr.hbm [resolvable:$true] %s27
      %s29 = sshll.u32 [#allocation5], 4
      %s30 = int_to_ptr.vmem [resolvable:$true] %s29
      %35 = dma.hbm_to_vmem [thread:$0]  %s28, 64, %s30, [#allocation6], 32, 32, 2
    $region9: #{tpu_custom_call.1} parent=1 // pred_fallthru
      _
    // Predicated region
    $region10: #{tpu_custom_call.1} parent=1 // pred_check
      _
    $region11: #{tpu_custom_call.1} parent=1 // pred_check_branch
      %37 = sbr.rel (0) target = $region13
    $region12: #{tpu_custom_call.1} parent=1 // pred_region
      %39 = dma.done [#allocation3], 256
    $region13: #{tpu_custom_call.1} parent=1 // pred_fallthru
      _
    // Predicated region
    $region14: #{tpu_custom_call.1} parent=1 // pred_check
      _
    $region15: #{tpu_custom_call.1} parent=1 // pred_check_branch
      %41 = sbr.rel (0) target = $region17
    $region16: #{tpu_custom_call.1} parent=1 // pred_region
      %43 = dma.done [#allocation6], 64
    $region17: #{tpu_custom_call.1} parent=1 // pred_fallthru
      _
    %v44 = vld [vmem:[#allocation2] sm:$0xff]
    %v45 = vld [vmem:[#allocation2 + $0x8] sm:$0xff]
    %v46 = vld [vmem:[#allocation5] sm:$0x3]
    %v47 = vld [vmem:[#allocation5 + $0x2] sm:$0x3]
    %50 = vst [vmem:[#allocation1] ss:$2 sm:$0xff] %v44
    %v51 = vld.sshfl [vmem:[#allocation1] sm:$0xff pattern:$0x75316420]
    %v52 = vld.sshfl [vmem:[#allocation1 + $0x8] sm:$0xff pattern:$0x75316420]
    %s53 = scalar_lea.vmem [#allocation1], 16
    %54 = vst [vmem:[%s53] ss:$2 sm:$0xff] %v45
    %v55 = vld.sshfl [vmem:[#allocation1 + $0x10] sm:$0xff pattern:$0x75316420]
    %v56 = vld.sshfl [vmem:[#allocation1 + $0x18] sm:$0xff pattern:$0x75316420]
    %vm61 = vcmask 1043456
    %v62 = vsel %vm61, %v51, -inf
    %v63 = vrot.slane %v62, 4
    %v64 = vmax.f32 %v62, %v63
    %v65 = vrot.slane %v64, 2
    %v66 = vmax.f32 %v64, %v65
    %v67 = vrot.slane %v66, 1
    %v68 = vmax.f32 %v66, %v67
    %v69 = vsel %vm61, %v52, -inf
    %v70 = vrot.slane %v69, 4
    %v71 = vmax.f32 %v69, %v70
    %v72 = vrot.slane %v71, 2
    %v73 = vmax.f32 %v71, %v72
    %v74 = vrot.slane %v73, 1
    %v75 = vmax.f32 %v73, %v74
    %v76 = vsel %vm61, %v55, -inf
    %v77 = vrot.slane %v76, 4
    %v78 = vmax.f32 %v76, %v77
    %v79 = vrot.slane %v78, 2
    %v80 = vmax.f32 %v78, %v79
    %v81 = vrot.slane %v80, 1
    %v82 = vmax.f32 %v80, %v81
    %v83 = vsel %vm61, %v56, -inf
    %v84 = vrot.slane %v83, 4
    %v85 = vmax.f32 %v83, %v84
    %v86 = vrot.slane %v85, 2
    %v87 = vmax.f32 %v85, %v86
    %v88 = vrot.slane %v87, 1
    %v89 = vmax.f32 %v87, %v88
    %v94 = vrot.slane %v75, 4
    %v95 = vrot.slane %v89, 4
    %v96 = vsel %vm61, %v68, %v94
    %v97 = vsel %vm61, %v82, %v95
    %v100 = vsub.f32 %v44, %v96
    %v101 = vsub.f32 %v45, %v97
    %v102 = vmul.f32 %v100, 1.442695
    %v103 = vpow.pop %v102
    %v104 = vmul.f32 %v101, 1.442695
    %v105 = vpow.pop %v104
    %108 = vst [vmem:[#allocation1] ss:$2 sm:$0xff] %v103
    %v109 = vld.sshfl [vmem:[#allocation1] sm:$0xff pattern:$0x75316420]
    %v110 = vld.sshfl [vmem:[#allocation1 + $0x8] sm:$0xff pattern:$0x75316420]
    %s111 = scalar_lea.vmem [#allocation1], 16
    %112 = vst [vmem:[%s111] ss:$2 sm:$0xff] %v105
    %v113 = vld.sshfl [vmem:[#allocation1 + $0x10] sm:$0xff pattern:$0x75316420]
    %v114 = vld.sshfl [vmem:[#allocation1 + $0x18] sm:$0xff pattern:$0x75316420]
    %v119 = vsel %vm61, %v109, 0.0
    %v120 = vrot.slane %v119, 4
    %v121 = vadd.f32 %v119, %v120
    %v122 = vrot.slane %v121, 2
    %v123 = vadd.f32 %v121, %v122
    %v124 = vrot.slane %v123, 1
    %v125 = vadd.f32 %v123, %v124
    %v126 = vsel %vm61, %v110, 0.0
    %v127 = vrot.slane %v126, 4
    %v128 = vadd.f32 %v126, %v127
    %v129 = vrot.slane %v128, 2
    %v130 = vadd.f32 %v128, %v129
    %v131 = vrot.slane %v130, 1
    %v132 = vadd.f32 %v130, %v131
    %v133 = vsel %vm61, %v113, 0.0
    %v134 = vrot.slane %v133, 4
    %v135 = vadd.f32 %v133, %v134
    %v136 = vrot.slane %v135, 2
    %v137 = vadd.f32 %v135, %v136
    %v138 = vrot.slane %v137, 1
    %v139 = vadd.f32 %v137, %v138
    %v140 = vsel %vm61, %v114, 0.0
    %v141 = vrot.slane %v140, 4
    %v142 = vadd.f32 %v140, %v141
    %v143 = vrot.slane %v142, 2
    %v144 = vadd.f32 %v142, %v143
    %v145 = vrot.slane %v144, 1
    %v146 = vadd.f32 %v144, %v145
    %v147 = vlaneseq
    %v148 = vshrl.u32 %v147, 7
    %v149 = vperm.slane %v46, 0
    %v150 = vperm.slane %v46, 1
    %v151 = vperm.slane %v47, 0
    %v152 = vperm.slane %v47, 1
    %vm153 = vcmp.eq.s32.totalorder %v148, %v149
    %vm154 = vcmp.eq.s32.totalorder %v148, %v150
    %vm155 = vcmp.eq.s32.totalorder %v148, %v151
    %vm156 = vcmp.eq.s32.totalorder %v148, %v152
    %159 = vst [vmem:[#allocation1] ss:$2 sm:$0xff] %v100
    %v160 = vld.sshfl [vmem:[#allocation1] sm:$0xff pattern:$0x75316420]
    %v161 = vld.sshfl [vmem:[#allocation1 + $0x8] sm:$0xff pattern:$0x75316420]
    %s162 = scalar_lea.vmem [#allocation1], 16
    %163 = vst [vmem:[%s162] ss:$2 sm:$0xff] %v101
    %v164 = vld.sshfl [vmem:[#allocation1 + $0x10] sm:$0xff pattern:$0x75316420]
    %v165 = vld.sshfl [vmem:[#allocation1 + $0x18] sm:$0xff pattern:$0x75316420]
    %v170 = vsel %vm153, %v160, 0.0
    %v171 = vsel %vm154, %v161, 0.0
    %v172 = vsel %vm155, %v164, 0.0
    %v173 = vsel %vm156, %v165, 0.0
    %v174 = vsel %vm61, %v170, 0.0
    %v175 = vrot.slane %v174, 4
    %v176 = vadd.f32 %v174, %v175
    %v177 = vrot.slane %v176, 2
    %v178 = vadd.f32 %v176, %v177
    %v179 = vrot.slane %v178, 1
    %v180 = vadd.f32 %v178, %v179
    %v181 = vsel %vm61, %v171, 0.0
    %v182 = vrot.slane %v181, 4
    %v183 = vadd.f32 %v181, %v182
    %v184 = vrot.slane %v183, 2
    %v185 = vadd.f32 %v183, %v184
    %v186 = vrot.slane %v185, 1
    %v187 = vadd.f32 %v185, %v186
    %v188 = vsel %vm61, %v172, 0.0
    %v189 = vrot.slane %v188, 4
    %v190 = vadd.f32 %v188, %v189
    %v191 = vrot.slane %v190, 2
    %v192 = vadd.f32 %v190, %v191
    %v193 = vrot.slane %v192, 1
    %v194 = vadd.f32 %v192, %v193
    %v195 = vsel %vm61, %v173, 0.0
    %v196 = vrot.slane %v195, 4
    %v197 = vadd.f32 %v195, %v196
    %v198 = vrot.slane %v197, 2
    %v199 = vadd.f32 %v197, %v198
    %v200 = vrot.slane %v199, 1
    %v201 = vadd.f32 %v199, %v200
    %v202 = vlog2.pop %v125
    %v203 = vmul.f32 %v202, 0.6931472
    %v204 = vlog2.pop %v132
    %v205 = vmul.f32 %v204, 0.6931472
    %v206 = vlog2.pop %v139
    %v207 = vmul.f32 %v206, 0.6931472
    %v208 = vlog2.pop %v146
    %v209 = vmul.f32 %v208, 0.6931472
    %v210 = vsub.f32 %v203, %v180
    %v211 = vsub.f32 %v205, %v187
    %v212 = vsub.f32 %v207, %v194
    %v213 = vsub.f32 %v209, %v201
    %vm214 = vcmask 1040384
    %v215 = vsel %vm214, %v210, 0.0
    %v216 = vsel %vm214, %v211, 0.0
    %v217 = vadd.f32 %v215, %v216
    %v218 = vsel %vm214, %v212, 0.0
    %v219 = vadd.f32 %v217, %v218
    %v220 = vsel %vm214, %v213, 0.0
    %v221 = vadd.f32 %v219, %v220
    %222 = vadd.xlane.f32.xlu0 %v221
    %v223 = vpop.xlane.xlu0 %222
    %v224 = vrot.slane %v223, 4
    %v225 = vadd.f32 %v223, %v224
    %v226 = vrot.slane %v225, 2
    %v227 = vadd.f32 %v225, %v226
    %v228 = vrot.slane %v227, 1
    %v229 = vadd.f32 %v227, %v228
    %s230 = vtos %v229
    %v231 = vstv %s230
    %vm232 = vcmask 0
    %233 = vst.msk [vmem:[#allocation7] sm:$0x1] %vm232, %v231
    // Predicated region
    $region18: #{tpu_custom_call.1} parent=1 // pred_check
      _
    $region19: #{tpu_custom_call.1} parent=1 // pred_check_branch
      %235 = sbr.rel (0) target = $region21
    $region20: #{tpu_custom_call.1} parent=1 // pred_region
      %237 = vsyncadd [#allocation4], 0
      %s239 = sshll.u32 [#allocation7], 4
      %s240 = int_to_ptr.vmem [resolvable:$true] %s239
      %s241 = sshll.u32 %s2, 4
      %s242 = int_to_ptr.hbm [resolvable:$true] %s241
      %244 = dma.vmem_to_hbm [thread:$0]  %s240, 16, %s242, [#allocation4]
    $region21: #{tpu_custom_call.1} parent=1 // pred_fallthru
      _
    // Predicated region
    $region22: #{tpu_custom_call.1} parent=1 // pred_check
      _
    $region23: #{tpu_custom_call.1} parent=1 // pred_check_branch
      %246 = sbr.rel (0) target = $region25
    $region24: #{tpu_custom_call.1} parent=1 // pred_region
      %248 = dma.done [#allocation4], 16
    $region25: #{tpu_custom_call.1} parent=1 // pred_fallthru
      _
    %249 = vsyncpa [#allocation3], 1
    %250 = vsyncpa [#allocation6], 1
    %251 = vsyncpa [#allocation4], 1

</llo_original>
